<compile_context>
chip_gen: v7x
topology: tpu7x:2x2x1
jax: 0.10.0
libtpu: 0.0.40
codegen_flags: <defaults>
</compile_context>

<pallas_src>
import functools

import jax
import jax.numpy as jnp
from jax.experimental import pallas as pl
from jax.experimental.pallas import tpu as pltpu


def _round_up(x, m):
    return (x + m - 1) // m * m


def _cdiv(a, b):
    return (a + b - 1) // b


# ---------------------------------------------------------------------------
# Shared per-tile math (getPreferences + projection_transH + score), fused.
#   u_e, i_e : (TB, E) f32
#   m_ref    : (E, 2E) f32 Ref   [concat_m]   or   (2, E, E) f32 Ref
# Returns (TB,) f32 scores (row-local only; padded rows are harmless).
# ---------------------------------------------------------------------------
def _score_tile(u_e, i_e, m_ref, *, l1_flag, e_dim, concat_m):
    s = u_e + i_e
    if concat_m:
        rn = jnp.dot(s, m_ref[...], preferred_element_type=jnp.float32)
        r_e, norm = rn[:, :e_dim], rn[:, e_dim:]
    else:
        r_e = jnp.dot(s, m_ref[0], preferred_element_type=jnp.float32)
        norm = jnp.dot(s, m_ref[1], preferred_element_type=jnp.float32)
    d0 = u_e - i_e
    diff = d0 - jnp.sum(d0 * norm, axis=1, keepdims=True) * norm + r_e
    if l1_flag:
        return jnp.sum(jnp.abs(diff), axis=1)
    return jnp.sum(diff * diff, axis=1)


# ---------------------------------------------------------------------------
# Path A: u_e / i_e pre-gathered by XLA, streamed through the auto pipeline.
# ---------------------------------------------------------------------------
def _transup_kernel(u_e_ref, i_e_ref, m_ref, score_ref, *, l1_flag, e_dim, concat_m):
    u_e = u_e_ref[...].astype(jnp.float32)
    i_e = i_e_ref[...].astype(jnp.float32)
    sc = _score_tile(u_e, i_e, m_ref, l1_flag=l1_flag, e_dim=e_dim, concat_m=concat_m)
    score_ref[...] = sc[None, :].astype(jnp.float32)


# ---------------------------------------------------------------------------
# Path B: fused gather.  ids in SMEM (scalar prefetch), tables in HBM (pl.ANY),
# per-row DMA into VMEM scratch.  Each grid step is self-contained (issue +
# wait on its own semaphore slot), so "parallel" megacore sharding stays safe.
# ---------------------------------------------------------------------------
def _transup_gather_kernel(u_ids_ref, i_ids_ref,          # SMEM scalar prefetch
                           user_ref, item_ref,             # HBM tables (pl.ANY)
                           m_ref,                          # resident VMEM
                           score_ref,                      # (1, TB) output
                           u_buf, i_buf, sem,              # scratch
                           *, l1_flag, e_dim, concat_m, tb):
    t = pl.program_id(0)
    slot = t % 2                      # alternate scratch buffers between steps
    base = t * tb

    def issue(r, carry):
        pltpu.make_async_copy(user_ref.at[u_ids_ref[base + r]],
                              u_buf.at[slot, r], sem.at[slot, 0]).start()
        pltpu.make_async_copy(item_ref.at[i_ids_ref[base + r]],
                              i_buf.at[slot, r], sem.at[slot, 1]).start()
        return carry
    jax.lax.fori_loop(0, tb, issue, 0)

    def drain(r, carry):
        # One wait per issued row copy (same-sized descriptor).
        pltpu.make_async_copy(user_ref.at[0], u_buf.at[slot, 0], sem.at[slot, 0]).wait()
        pltpu.make_async_copy(item_ref.at[0], i_buf.at[slot, 0], sem.at[slot, 1]).wait()
        return carry
    jax.lax.fori_loop(0, tb, drain, 0)

    u_e = u_buf[slot].astype(jnp.float32)
    i_e = i_buf[slot].astype(jnp.float32)
    sc = _score_tile(u_e, i_e, m_ref, l1_flag=l1_flag, e_dim=e_dim, concat_m=concat_m)
    score_ref[...] = sc[None, :].astype(jnp.float32)


def _choose_tb(batch, e_dim, in_bytes, tile_batch):
    # Keep the double-buffered (tb, E) u/i streams well inside scoped VMEM
    # (v7x: 64 MiB physical / 32 MiB default scoped).
    budget = 20 * 1024 * 1024
    per_row = 2 * 2 * e_dim * in_bytes
    tb_vmem = max(128, budget // max(per_row, 1) // 128 * 128)
    tb_cap = min(max(128, _round_up(tile_batch, 128)), tb_vmem)
    if batch > tb_cap:
        return tb_cap
    if batch > 128:
        # >=2 grid steps so v7x's second TensorCore gets a share of the batch.
        return min(tb_cap, _round_up(_cdiv(batch, 2), 128))
    return 128


def transup_forward(u_ids, i_ids, user_weight, item_weight,
                    pref_weight, pref_norm_weight,
                    *, l1_flag=True, tile_batch=1024, fuse_gather=None):
    """TransUPModel.forward (use_st_gumbel=False).  Returns score of shape (batch,)."""
    batch = int(u_ids.shape[0])
    e_dim = int(user_weight.shape[1])
    in_dtype = user_weight.dtype
    in_bytes = jnp.dtype(in_dtype).itemsize

    # getPreferences fused into a small resident matrix (f32: tiny, keeps
    # accuracy even when the big tables are stored in bf16).
    pw = pref_weight.astype(jnp.float32)
    nw = pref_norm_weight.astype(jnp.float32)
    m_r = 0.5 * (pw.T @ pw)                            # (E, E)
    m_n = 0.5 * (pw.T @ nw)                            # (E, E)
    concat_m = (e_dim % 128 == 0)
    if concat_m:
        m = jnp.concatenate([m_r, m_n], axis=1)        # (E, 2E): one MXU pass / tile
    else:
        m = jnp.stack([m_r, m_n], axis=0)              # (2, E, E): two dots, no unaligned slices

    if fuse_gather is None:
        # Per-row DMA gather only pays off once a row is >= ~512 B.
        fuse_gather = (e_dim * in_bytes >= 512)

    tb = _choose_tb(batch, e_dim, in_bytes, tile_batch)
    n_tiles = _cdiv(batch, tb)
    out_len = n_tiles * tb                             # lane-dense, unmasked score stores

    # Resident-M buffering / scoped-VMEM budget.
    m_bufs = 2
    m_spec_kwargs = {}
    if e_dim >= 1024:
        m_bufs = 1
        m_spec_kwargs["pipeline_mode"] = pl.Buffered(1)   # constant index_map, never re-fetched
    n_m = m.ndim
    m_spec = pl.BlockSpec(m.shape, lambda i, *_: (0,) * n_m, **m_spec_kwargs)

    vmem_est = (2 * 2 * tb * e_dim * in_bytes           # double-buffered u/i tiles
                + m_bufs * m.size * 4                   # resident M
                + 2 * 2 * tb * 4)                       # score blocks
    vmem_limit = None
    if vmem_est > 30 * 1024 * 1024:
        vmem_limit = min(int(vmem_est * 1.25), 100 * 1024 * 1024)
    cparams = pltpu.CompilerParams(dimension_semantics=("parallel",),
                                   vmem_limit_bytes=vmem_limit)

    out_shape = jax.ShapeDtypeStruct((1, out_len), jnp.float32)
    out_spec = pl.BlockSpec((1, tb), lambda i, *_: (0, i))

    if fuse_gather:
        # Fused gather: no (B, E) HBM round trip from an XLA gather.
        u_ids_p = jnp.zeros((out_len,), jnp.int32).at[:batch].set(u_ids.astype(jnp.int32))
        i_ids_p = jnp.zeros((out_len,), jnp.int32).at[:batch].set(i_ids.astype(jnp.int32))
        kernel = functools.partial(_transup_gather_kernel, l1_flag=l1_flag,
                                   e_dim=e_dim, concat_m=concat_m, tb=tb)
        score = pl.pallas_call(
            kernel,
            out_shape=out_shape,
            grid_spec=pltpu.PrefetchScalarGridSpec(
                num_scalar_prefetch=2,
                grid=(n_tiles,),
                in_specs=[
                    pl.BlockSpec(memory_space=pl.ANY),      # user table (HBM)
                    pl.BlockSpec(memory_space=pl.ANY),      # item table (HBM)
                    m_spec,
                ],
                out_specs=out_spec,
                scratch_shapes=[
                    pltpu.VMEM((2, tb, e_dim), user_weight.dtype),
                    pltpu.VMEM((2, tb, e_dim), item_weight.dtype),
                    pltpu.SemaphoreType.DMA((2, 2)),
                ],
            ),
            compiler_params=cparams,
        )(u_ids_p, i_ids_p, user_weight, item_weight, m)
    else:
        # Small rows: keep the XLA gather, stream (tb, E) blocks through the
        # automatic double-buffered pipeline (no per-call pad copies of the
        # dominant streams; ragged edge block is masked by Pallas).
        u_e = user_weight[u_ids]                        # (B, E)
        i_e = item_weight[i_ids]
        if batch < tb:                                  # tiny batches only: cheap
            u_e = jnp.pad(u_e, ((0, tb - batch), (0, 0)))
            i_e = jnp.pad(i_e, ((0, tb - batch), (0, 0)))
        kernel = functools.partial(_transup_kernel, l1_flag=l1_flag,
                                   e_dim=e_dim, concat_m=concat_m)
        score = pl.pallas_call(
            kernel,
            out_shape=out_shape,
            grid_spec=pltpu.PrefetchScalarGridSpec(
                num_scalar_prefetch=0,
                grid=(n_tiles,),
                in_specs=[
                    pl.BlockSpec((tb, e_dim), lambda i: (i, 0)),
                    pl.BlockSpec((tb, e_dim), lambda i: (i, 0)),
                    m_spec,
                ],
                out_specs=out_spec,
            ),
            compiler_params=cparams,
        )(u_e, i_e, m)

    return score[0, :batch]


# ---------------------------------------------------------------------------
# Deterministic parameter construction (mirrors __init__):
# xavier_uniform then row-wise L2 normalization.
# ---------------------------------------------------------------------------
def _xavier_uniform(key, shape):
    fan_out, fan_in = shape
    bound = jnp.sqrt(6.0 / (fan_in + fan_out))
    return jax.random.uniform(key, shape, jnp.float32, -bound, bound)


def _l2_normalize_rows(w, eps=1e-12):
    n = jnp.sqrt(jnp.sum(w * w, axis=1, keepdims=True))
    return w / jnp.maximum(n, eps)


def make_params(key, user_total, item_total, preference_total, embedding_size,
                dtype=jnp.float32):
    # NOTE: bf16 table storage halves HBM traffic of this memory-bound kernel
    # and is the recommended production default; f32 here matches the module.
    k_u, k_i, k_p, k_n = jax.random.split(key, 4)
    user_w = _l2_normalize_rows(_xavier_uniform(k_u, (user_total, embedding_size)))
    item_w = _l2_normalize_rows(_xavier_uniform(k_i, (item_total, embedding_size)))
    pref_w = _l2_normalize_rows(_xavier_uniform(k_p, (preference_total, embedding_size)))
    norm_w = _l2_normalize_rows(_xavier_uniform(k_n, (preference_total, embedding_size)))
    return (user_w.astype(dtype), item_w.astype(dtype),
            pref_w.astype(dtype), norm_w.astype(dtype))


def _reference_forward(u_ids, i_ids, user_w, item_w, pref_w, norm_w, l1_flag=True):
    """Pure-JAX reference using the original (un-fused) PyTorch formulation."""
    u_e = user_w.astype(jnp.float32)[u_ids]
    i_e = item_w.astype(jnp.float32)[i_ids]
    pw = pref_w.astype(jnp.float32)
    nw = norm_w.astype(jnp.float32)
    pre_probs = (u_e + i_e) @ pw.T / 2.0
    r_e = pre_probs @ pw
    norm = pre_probs @ nw
    proj_u = u_e - jnp.sum(u_e * norm, 1, keepdims=True) * norm
    proj_i = i_e - jnp.sum(i_e * norm, 1, keepdims=True) * norm
    d = proj_u + r_e - proj_i
    return jnp.sum(jnp.abs(d), 1) if l1_flag else jnp.sum(d * d, 1)


# TODO(synk): st_gumbel_softmax branch (use_st_gumbel=True) draws fresh uniform
# noise each forward (stochastic one-hot pre_probs), so the (E,E) fusion no
# longer applies; it would need pltpu.prng_* in-kernel and is not implemented.


if __name__ == "__main__":
    key = jax.random.PRNGKey(0)
    (k_params, k_uids, k_iids, k_uids2, k_iids2,
     k_params2, k_uids3, k_iids3) = jax.random.split(key, 8)

    # --- small module-consistent shapes (E=32 -> XLA-gather path) -------------
    embedding_size, user_total, item_total, preference_total, batch = 32, 16, 16, 8, 8
    user_w, item_w, pref_w, norm_w = make_params(
        k_params, user_total, item_total, preference_total, embedding_size)
    u_ids = jax.random.randint(k_uids, (batch,), 0, user_total, dtype=jnp.int32)
    i_ids = jax.random.randint(k_iids, (batch,), 0, item_total, dtype=jnp.int32)

    score = jax.block_until_ready(
        transup_forward(u_ids, i_ids, user_w, item_w, pref_w, norm_w, l1_flag=True))
    ref = _reference_forward(u_ids, i_ids, user_w, item_w, pref_w, norm_w, True)
    assert score.shape == (batch,)
    assert jnp.allclose(score, ref, atol=1e-4, rtol=1e-4), (score, ref)

    # --- L2 (squared) path -----------------------------------------------------
    score_l2 = jax.block_until_ready(
        transup_forward(u_ids, i_ids, user_w, item_w, pref_w, norm_w, l1_flag=False))
    ref_l2 = _reference_forward(u_ids, i_ids, user_w, item_w, pref_w, norm_w, False)
    assert jnp.allclose(score_l2, ref_l2, atol=1e-4, rtol=1e-4), (score_l2, ref_l2)

    # --- ragged multi-tile grid (batch=300, tb=128 -> 3 tiles, masked edge) ----
    batch_big = 300
    u_ids_b = jax.random.randint(k_uids2, (batch_big,), 0, user_total, dtype=jnp.int32)
    i_ids_b = jax.random.randint(k_iids2, (batch_big,), 0, item_total, dtype=jnp.int32)
    score_b = jax.block_until_ready(
        transup_forward(u_ids_b, i_ids_b, user_w, item_w, pref_w, norm_w,
                        l1_flag=True, tile_batch=128))
    ref_b = _reference_forward(u_ids_b, i_ids_b, user_w, item_w, pref_w, norm_w, True)
    assert score_b.shape == (batch_big,)
    assert jnp.allclose(score_b, ref_b, atol=1e-4, rtol=1e-4), (score_b, ref_b)

    # --- bf16 table storage (recommended: halves HBM bytes) --------------------
    score_bf16 = jax.block_until_ready(
        transup_forward(u_ids, i_ids,
                        user_w.astype(jnp.bfloat16), item_w.astype(jnp.bfloat16),
                        pref_w.astype(jnp.bfloat16), norm_w.astype(jnp.bfloat16),
                        l1_flag=True))
    assert jnp.allclose(score_bf16, ref, atol=5e-2, rtol=5e-2), (score_bf16, ref)

    # --- fused in-kernel gather path (E=128 f32: rows >= 512 B) ----------------
    e2, ut2, it2, pt2, batch2 = 128, 32, 40, 8, 200
    user_w2, item_w2, pref_w2, norm_w2 = make_params(k_params2, ut2, it2, pt2, e2)
    u_ids2 = jax.random.randint(k_uids3, (batch2,), 0, ut2, dtype=jnp.int32)
    i_ids2 = jax.random.randint(k_iids3, (batch2,), 0, it2, dtype=jnp.int32)
    score_g = jax.block_until_ready(
        transup_forward(u_ids2, i_ids2, user_w2, item_w2, pref_w2, norm_w2,
                        l1_flag=True))
    ref_g = _reference_forward(u_ids2, i_ids2, user_w2, item_w2, pref_w2, norm_w2, True)
    assert score_g.shape == (batch2,)
    assert jnp.allclose(score_g, ref_g, atol=1e-3, rtol=1e-3), (score_g, ref_g)

    print("KERNEL_OK")
</pallas_src>

<mosaic_0001>
module attributes {stable_mosaic.version = 11 : i64} {
  func.func @_transup_kernel(%arg0: i32, %arg1: memref<128x32xf32, #tpu.memory_space<vmem>>, %arg2: memref<128x32xf32, #tpu.memory_space<vmem>>, %arg3: memref<2x32x32xf32, #tpu.memory_space<vmem>>, %arg4: memref<1x128xf32, #tpu.memory_space<vmem>>) attributes {dimension_semantics = [#tpu.dimension_semantics<parallel>], iteration_bounds = array<i64: 1>, scalar_prefetch = 0 : i64, scratch_operands = 0 : i64, tpu.core_type = #tpu.core_type<tc>, window_params = [{transform_indices = @transform_0, window_bounds = array<i64: 128, 32>}, {transform_indices = @transform_1, window_bounds = array<i64: 128, 32>}, {pipeline_mode = #tpu.pipeline_mode<synchronous>, transform_indices = @transform_2, window_bounds = array<i64: 2, 32, 32>}, {transform_indices = @transform_3, window_bounds = array<i64: 1, 128>}]} {
    %c0 = arith.constant 0 : index
    %c0_0 = arith.constant 0 : index
    %0 = vector.load %arg1[%c0, %c0_0] : memref<128x32xf32, #tpu.memory_space<vmem>>, vector<128x32xf32>
    %c0_1 = arith.constant 0 : index
    %c0_2 = arith.constant 0 : index
    %1 = vector.load %arg2[%c0_1, %c0_2] : memref<128x32xf32, #tpu.memory_space<vmem>>, vector<128x32xf32>
    %2 = arith.addf %0, %1 : vector<128x32xf32>
    %c0_3 = arith.constant 0 : index
    %c0_4 = arith.constant 0 : index
    %c0_5 = arith.constant 0 : index
    %3 = vector.load %arg3[%c0_3, %c0_4, %c0_5] : memref<2x32x32xf32, #tpu.memory_space<vmem>>, vector<1x32x32xf32>
    %4 = vector.shape_cast %3 : vector<1x32x32xf32> to vector<32x32xf32>
    %cst = arith.constant dense<0.000000e+00> : vector<128x32xf32>
    %5 = tpu.matmul %2, %4, %cst {dimension_numbers = #tpu.dot_dimension_numbers<[1], [0], [0], [1], [0, 0, 1, 1], [], []>} : vector<128x32xf32>, vector<32x32xf32>, vector<128x32xf32> -> vector<128x32xf32>
    %c1 = arith.constant 1 : index
    %c0_6 = arith.constant 0 : index
    %c0_7 = arith.constant 0 : index
    %6 = vector.load %arg3[%c1, %c0_6, %c0_7] : memref<2x32x32xf32, #tpu.memory_space<vmem>>, vector<1x32x32xf32>
    %7 = vector.shape_cast %6 : vector<1x32x32xf32> to vector<32x32xf32>
    %cst_8 = arith.constant dense<0.000000e+00> : vector<128x32xf32>
    %8 = tpu.matmul %2, %7, %cst_8 {dimension_numbers = #tpu.dot_dimension_numbers<[1], [0], [0], [1], [0, 0, 1, 1], [], []>} : vector<128x32xf32>, vector<32x32xf32>, vector<128x32xf32> -> vector<128x32xf32>
    %9 = arith.subf %0, %1 : vector<128x32xf32>
    %10 = arith.mulf %9, %8 : vector<128x32xf32>
    %cst_9 = arith.constant dense<0.000000e+00> : vector<128xf32>
    %11 = vector.multi_reduction <add>, %10, %cst_9 [1] : vector<128x32xf32> to vector<128xf32>
    %12 = vector.shape_cast %11 : vector<128xf32> to vector<128x1xf32>
    %13 = vector.broadcast %12 : vector<128x1xf32> to vector<128x32xf32>
    %14 = arith.mulf %13, %8 : vector<128x32xf32>
    %15 = arith.subf %9, %14 : vector<128x32xf32>
    %16 = arith.addf %15, %5 : vector<128x32xf32>
    %17 = math.absf %16 : vector<128x32xf32>
    %cst_10 = arith.constant dense<0.000000e+00> : vector<128xf32>
    %18 = vector.multi_reduction <add>, %17, %cst_10 [1] : vector<128x32xf32> to vector<128xf32>
    %19 = vector.shape_cast %18 : vector<128xf32> to vector<1x128xf32>
    %c0_11 = arith.constant 0 : index
    %c0_12 = arith.constant 0 : index
    %20 = vector.load %arg4[%c0_11, %c0_12] : memref<1x128xf32, #tpu.memory_space<vmem>>, vector<1x128xf32>
    tpu.vector_store %arg4[%c0_11, %c0_12], %19 {strides = array<i32>} : memref<1x128xf32, #tpu.memory_space<vmem>>, vector<1x128xf32>,
    return
  }
  func.func @transform_0(%arg0: i32) -> (i32, i32) {
    %c0_i32 = arith.constant 0 : i32
    %c0_i32_0 = arith.constant 0 : i32
    return %arg0, %c0_i32 : i32, i32
  }
  func.func @transform_1(%arg0: i32) -> (i32, i32) {
    %c0_i32 = arith.constant 0 : i32
    %c0_i32_0 = arith.constant 0 : i32
    return %arg0, %c0_i32 : i32, i32
  }
  func.func @transform_2(%arg0: i32) -> (i32, i32, i32) {
    %c0_i32 = arith.constant 0 : i32
    %c0_i32_0 = arith.constant 0 : i32
    %c0_i32_1 = arith.constant 0 : i32
    %c0_i32_2 = arith.constant 0 : i32
    return %c0_i32, %c0_i32_0, %c0_i32_1 : i32, i32, i32
  }
  func.func @transform_3(%arg0: i32) -> (i32, i32) {
    %c0_i32 = arith.constant 0 : i32
    %c0_i32_0 = arith.constant 0 : i32
    return %c0_i32, %arg0 : i32, i32
  }
}

</mosaic_0001>

<llo_original>
// kernel: tpu_custom_call.1
$region0: #{tpu_custom_call.1}
  #allocation0 [shape = 'u32[]', space=smem, size = 0x4, offset = 0x4, fixed_abs, tag = 'smem constant byte address 0x4 - core index']
  #allocation1 [shape = 'u32[144,128]{1,0:T(1,128)}', space=vmem, size = 0x12000, scoped, tag = 'internal scratch']
  %s0 = inlined_call_operand.vmem [shape: f32[128,32], index: 0, kind: input, shape index: {}]
  %s1 = inlined_call_operand.vmem [shape: f32[128,32], index: 1, kind: input, shape index: {}]
  %s2 = inlined_call_operand.vmem [shape: f32[2,32,32], index: 2, kind: input, shape index: {}]
  %s3 = inlined_call_operand.hbm [shape: f32[1,128], index: 3, kind: output, shape index: {}]
  %s4 = sld [smem:[#allocation0]]
  $region22: #{tpu_custom_call.1} parent=0
    _
  %s6 = ssub.s32 1, %s4
  %s7 = scalar_select 0, %s6, %s4
  $region1: #{tpu_custom_call.1} parent=0
    #allocation2 [shape = 'u8[512]{0}', space=vmem, size = 0x400, scoped, tag = 'output window, operand 0, single buffered']
    #allocation3 [shape = 's32[1]{0}', space=sflag, size = 0x4, scoped, tag = 'scoped memory for tpu_custom_call.1']
    %8 = vsyncpa [#allocation3], 0
    // Predicated region
    $region2: #{tpu_custom_call.1} parent=1 // pred_check
      _
    $region3: #{tpu_custom_call.1} parent=1 // pred_check_branch
      %10 = sbr.rel (0) target = $region5
    $region4: #{tpu_custom_call.1} parent=1 // pred_region
      _
    $region5: #{tpu_custom_call.1} parent=1 // pred_fallthru
      _
    // Predicated region
    $region6: #{tpu_custom_call.1} parent=1 // pred_check
      _
    $region7: #{tpu_custom_call.1} parent=1 // pred_check_branch
      %12 = sbr.rel (0) target = $region9
    $region8: #{tpu_custom_call.1} parent=1 // pred_region
      _
    $region9: #{tpu_custom_call.1} parent=1 // pred_fallthru
      _
    // Predicated region
    $region10: #{tpu_custom_call.1} parent=1 // pred_check
      _
    $region11: #{tpu_custom_call.1} parent=1 // pred_check_branch
      %14 = sbr.rel (0) target = $region13
    $region12: #{tpu_custom_call.1} parent=1 // pred_region
      _
    $region13: #{tpu_custom_call.1} parent=1 // pred_fallthru
      _
    %v15 = vld [vmem:[%s0] sm:$0xff]
    %v16 = vld [vmem:[%s0 + $0x8] sm:$0xff]
    %v17 = vld [vmem:[%s0 + $0x10] sm:$0xff]
    %v18 = vld [vmem:[%s0 + $0x18] sm:$0xff]
    %v19 = vld [vmem:[%s0 + $0x20] sm:$0xff]
    %v20 = vld [vmem:[%s0 + $0x28] sm:$0xff]
    %v21 = vld [vmem:[%s0 + $0x30] sm:$0xff]
    %v22 = vld [vmem:[%s0 + $0x38] sm:$0xff]
    %v23 = vld [vmem:[%s0 + $0x40] sm:$0xff]
    %v24 = vld [vmem:[%s0 + $0x48] sm:$0xff]
    %v25 = vld [vmem:[%s0 + $0x50] sm:$0xff]
    %v26 = vld [vmem:[%s0 + $0x58] sm:$0xff]
    %v27 = vld [vmem:[%s0 + $0x60] sm:$0xff]
    %v28 = vld [vmem:[%s0 + $0x68] sm:$0xff]
    %v29 = vld [vmem:[%s0 + $0x70] sm:$0xff]
    %v30 = vld [vmem:[%s0 + $0x78] sm:$0xff]
    %v31 = vld [vmem:[%s1] sm:$0xff]
    %v32 = vld [vmem:[%s1 + $0x8] sm:$0xff]
    %v33 = vld [vmem:[%s1 + $0x10] sm:$0xff]
    %v34 = vld [vmem:[%s1 + $0x18] sm:$0xff]
    %v35 = vld [vmem:[%s1 + $0x20] sm:$0xff]
    %v36 = vld [vmem:[%s1 + $0x28] sm:$0xff]
    %v37 = vld [vmem:[%s1 + $0x30] sm:$0xff]
    %v38 = vld [vmem:[%s1 + $0x38] sm:$0xff]
    %v39 = vld [vmem:[%s1 + $0x40] sm:$0xff]
    %v40 = vld [vmem:[%s1 + $0x48] sm:$0xff]
    %v41 = vld [vmem:[%s1 + $0x50] sm:$0xff]
    %v42 = vld [vmem:[%s1 + $0x58] sm:$0xff]
    %v43 = vld [vmem:[%s1 + $0x60] sm:$0xff]
    %v44 = vld [vmem:[%s1 + $0x68] sm:$0xff]
    %v45 = vld [vmem:[%s1 + $0x70] sm:$0xff]
    %v46 = vld [vmem:[%s1 + $0x78] sm:$0xff]
    %v47 = vadd.f32 %v15, %v31
    %v48 = vadd.f32 %v16, %v32
    %v49 = vadd.f32 %v17, %v33
    %v50 = vadd.f32 %v18, %v34
    %v51 = vadd.f32 %v19, %v35
    %v52 = vadd.f32 %v20, %v36
    %v53 = vadd.f32 %v21, %v37
    %v54 = vadd.f32 %v22, %v38
    %v55 = vadd.f32 %v23, %v39
    %v56 = vadd.f32 %v24, %v40
    %v57 = vadd.f32 %v25, %v41
    %v58 = vadd.f32 %v26, %v42
    %v59 = vadd.f32 %v27, %v43
    %v60 = vadd.f32 %v28, %v44
    %v61 = vadd.f32 %v29, %v45
    %v62 = vadd.f32 %v30, %v46
    %v63 = vld [vmem:[%s2] sm:$0xff]
    %v64 = vld [vmem:[%s2 + $0x8] sm:$0xff]
    %v65 = vld [vmem:[%s2 + $0x10] sm:$0xff]
    %v66 = vld [vmem:[%s2 + $0x18] sm:$0xff]
    %vm67 = vcmask 261120
    %v69 = vsel %vm67, %v47, 0
    %v72 = vsel %vm67, %v48, 0
    %v75 = vsel %vm67, %v49, 0
    %v78 = vsel %vm67, %v50, 0
    %v81 = vsel %vm67, %v51, 0
    %v84 = vsel %vm67, %v52, 0
    %v87 = vsel %vm67, %v53, 0
    %v90 = vsel %vm67, %v54, 0
    %v93 = vsel %vm67, %v55, 0
    %v96 = vsel %vm67, %v56, 0
    %v99 = vsel %vm67, %v57, 0
    %v102 = vsel %vm67, %v58, 0
    %v105 = vsel %vm67, %v59, 0
    %v108 = vsel %vm67, %v60, 0
    %v111 = vsel %vm67, %v61, 0
    %v114 = vsel %vm67, %v62, 0
    %116 = vmatprep.subr.mxu0 0.0
    %117 = vmatpush1.msra.mxu0 %v63
    %118 = vmatprep.subr.mxu0 0.0
    %119 = vmatpush1.msra.mxu0 %v64
    %120 = vmatprep.subr.mxu0 0.0
    %121 = vmatpush1.msra.mxu0 %v65
    %122 = vmatprep.subr.mxu0 0.0
    %123 = vmatpush1.msra.mxu0 %v66
    %124 = vmatprep.subr.mxu0 0.0
    %125 = vmatpush1.msra.mxu0 0.0
    %126 = vmatprep.subr.mxu0 0.0
    %127 = vmatpush1.msra.mxu0 0.0
    %128 = vmatprep.subr.mxu0 0.0
    %129 = vmatpush1.msra.mxu0 0.0
    %130 = vmatprep.subr.mxu0 0.0
    %131 = vmatpush1.msra.mxu0 0.0
    %132 = vmatprep.subr.mxu0 0.0
    %133 = vmatpush1.msra.mxu0 0.0
    %134 = vmatprep.subr.mxu0 0.0
    %135 = vmatpush1.msra.mxu0 0.0
    %136 = vmatprep.subr.mxu0 0.0
    %137 = vmatpush1.msra.mxu0 0.0
    %138 = vmatprep.subr.mxu0 0.0
    %139 = vmatpush1.msra.mxu0 0.0
    %140 = vmatprep.subr.mxu0 0.0
    %141 = vmatpush1.msra.mxu0 0.0
    %142 = vmatprep.subr.mxu0 0.0
    %143 = vmatpush1.msra.mxu0 0.0
    %144 = vmatprep.subr.mxu0 0.0
    %145 = vmatpush1.msra.mxu0 0.0
    %146 = vmatprep.subr.mxu0 0.0
    %147 = vmatpush1.msra.mxu0 0.0
    %148 = vmatprep.subr.mxu0 0.0
    %149 = vmatpush1.msra.mxu0 0.0
    %150 = vmatprep.subr.mxu0 0.0
    %151 = vmatpush1.msra.mxu0 0.0
    %152 = vmatprep.subr.mxu0 0.0
    %153 = vmatpush1.msra.mxu0 0.0
    %154 = vmatprep.subr.mxu0 0.0
    %155 = vmatpush1.msra.mxu0 0.0
    %156 = vmatprep.subr.mxu0 0.0
    %157 = vmatpush1.msra.mxu0 0.0
    %158 = vmatprep.subr.mxu0 0.0
    %159 = vmatpush1.msra.mxu0 0.0
    %160 = vmatprep.subr.mxu0 0.0
    %161 = vmatpush1.msra.mxu0 0.0
    %162 = vmatprep.subr.mxu0 0.0
    %163 = vmatpush1.msra.mxu0 0.0
    %164 = vmatprep.subr.mxu0 0.0
    %165 = vmatpush1.msra.mxu0 0.0
    %166 = vmatprep.subr.mxu0 0.0
    %167 = vmatpush1.msra.mxu0 0.0
    %168 = vmatprep.subr.mxu0 0.0
    %169 = vmatpush1.msra.mxu0 0.0
    %170 = vmatprep.subr.mxu0 0.0
    %171 = vmatpush1.msra.mxu0 0.0
    %172 = vmatprep.subr.mxu0 0.0
    %173 = vmatpush1.msra.mxu0 0.0
    %174 = vmatprep.subr.mxu0 0.0
    %175 = vmatpush1.msra.mxu0 0.0
    %176 = vmatprep.subr.mxu0 0.0
    %177 = vmatpush1.msra.mxu0 0.0
    %178 = vmatprep.subr.mxu0 0.0
    %179 = vmatpush1.msra.mxu0 0.0
    %180 = vmatprep.mubr.f32.mxu0 0.0
    %181 = vmatmul.mubr.f32.gmra.mrb[0].mxu0 %v69
    %v182 = vpop.f32.mrb[0].mxu0
    %v183 = vadd.f32 0.0, %v182
    %v184 = vpop.f32.mrb[0].mxu0
    %185 = vmatprep.mubr.f32.mxu0 0.0
    %186 = vmatmul.mubr.f32.gmra.mrb[0].mxu0 %v72
    %v187 = vpop.f32.mrb[0].mxu0
    %v188 = vadd.f32 0.0, %v187
    %v189 = vpop.f32.mrb[0].mxu0
    %190 = vmatprep.mubr.f32.mxu0 0.0
    %191 = vmatmul.mubr.f32.gmra.mrb[0].mxu0 %v75
    %v192 = vpop.f32.mrb[0].mxu0
    %v193 = vadd.f32 0.0, %v192
    %v194 = vpop.f32.mrb[0].mxu0
    %195 = vmatprep.mubr.f32.mxu0 0.0
    %196 = vmatmul.mubr.f32.gmra.mrb[0].mxu0 %v78
    %v197 = vpop.f32.mrb[0].mxu0
    %v198 = vadd.f32 0.0, %v197
    %v199 = vpop.f32.mrb[0].mxu0
    %200 = vmatprep.mubr.f32.mxu0 0.0
    %201 = vmatmul.mubr.f32.gmra.mrb[0].mxu0 %v81
    %v202 = vpop.f32.mrb[0].mxu0
    %v203 = vadd.f32 0.0, %v202
    %v204 = vpop.f32.mrb[0].mxu0
    %205 = vmatprep.mubr.f32.mxu0 0.0
    %206 = vmatmul.mubr.f32.gmra.mrb[0].mxu0 %v84
    %v207 = vpop.f32.mrb[0].mxu0
    %v208 = vadd.f32 0.0, %v207
    %v209 = vpop.f32.mrb[0].mxu0
    %210 = vmatprep.mubr.f32.mxu0 0.0
    %211 = vmatmul.mubr.f32.gmra.mrb[0].mxu0 %v87
    %v212 = vpop.f32.mrb[0].mxu0
    %v213 = vadd.f32 0.0, %v212
    %v214 = vpop.f32.mrb[0].mxu0
    %215 = vmatprep.mubr.f32.mxu0 0.0
    %216 = vmatmul.mubr.f32.gmra.mrb[0].mxu0 %v90
    %v217 = vpop.f32.mrb[0].mxu0
    %v218 = vadd.f32 0.0, %v217
    %v219 = vpop.f32.mrb[0].mxu0
    %220 = vmatprep.mubr.f32.mxu0 0.0
    %221 = vmatmul.mubr.f32.gmra.mrb[0].mxu0 %v93
    %v222 = vpop.f32.mrb[0].mxu0
    %v223 = vadd.f32 0.0, %v222
    %v224 = vpop.f32.mrb[0].mxu0
    %225 = vmatprep.mubr.f32.mxu0 0.0
    %226 = vmatmul.mubr.f32.gmra.mrb[0].mxu0 %v96
    %v227 = vpop.f32.mrb[0].mxu0
    %v228 = vadd.f32 0.0, %v227
    %v229 = vpop.f32.mrb[0].mxu0
    %230 = vmatprep.mubr.f32.mxu0 0.0
    %231 = vmatmul.mubr.f32.gmra.mrb[0].mxu0 %v99
    %v232 = vpop.f32.mrb[0].mxu0
    %v233 = vadd.f32 0.0, %v232
    %v234 = vpop.f32.mrb[0].mxu0
    %235 = vmatprep.mubr.f32.mxu0 0.0
    %236 = vmatmul.mubr.f32.gmra.mrb[0].mxu0 %v102
    %v237 = vpop.f32.mrb[0].mxu0
    %v238 = vadd.f32 0.0, %v237
    %v239 = vpop.f32.mrb[0].mxu0
    %240 = vmatprep.mubr.f32.mxu0 0.0
    %241 = vmatmul.mubr.f32.gmra.mrb[0].mxu0 %v105
    %v242 = vpop.f32.mrb[0].mxu0
    %v243 = vadd.f32 0.0, %v242
    %v244 = vpop.f32.mrb[0].mxu0
    %245 = vmatprep.mubr.f32.mxu0 0.0
    %246 = vmatmul.mubr.f32.gmra.mrb[0].mxu0 %v108
    %v247 = vpop.f32.mrb[0].mxu0
    %v248 = vadd.f32 0.0, %v247
    %v249 = vpop.f32.mrb[0].mxu0
    %250 = vmatprep.mubr.f32.mxu0 0.0
    %251 = vmatmul.mubr.f32.gmra.mrb[0].mxu0 %v111
    %v252 = vpop.f32.mrb[0].mxu0
    %v253 = vadd.f32 0.0, %v252
    %v254 = vpop.f32.mrb[0].mxu0
    %255 = vmatprep.mubr.f32.mxu0 0.0
    %256 = vmatmul.mubr.f32.gmra.mrb[0].mxu0 %v114
    %v257 = vpop.f32.mrb[0].mxu0
    %v258 = vadd.f32 0.0, %v257
    %v259 = vpop.f32.mrb[0].mxu0
    %260 = vdwg.mxu0
    %s261 = scalar_lea.vmem %s2, 32
    %v262 = vld [vmem:[%s261] sm:$0xff]
    %v263 = vld [vmem:[%s261 + $0x8] sm:$0xff]
    %v264 = vld [vmem:[%s261 + $0x10] sm:$0xff]
    %v265 = vld [vmem:[%s261 + $0x18] sm:$0xff]
    %266 = vmatprep.subr.mxu0 0.0
    %267 = vmatpush1.msra.mxu0 %v262
    %268 = vmatprep.subr.mxu0 0.0
    %269 = vmatpush1.msra.mxu0 %v263
    %270 = vmatprep.subr.mxu0 0.0
    %271 = vmatpush1.msra.mxu0 %v264
    %272 = vmatprep.subr.mxu0 0.0
    %273 = vmatpush1.msra.mxu0 %v265
    %274 = vmatprep.subr.mxu0 0.0
    %275 = vmatpush1.msra.mxu0 0.0
    %276 = vmatprep.subr.mxu0 0.0
    %277 = vmatpush1.msra.mxu0 0.0
    %278 = vmatprep.subr.mxu0 0.0
    %279 = vmatpush1.msra.mxu0 0.0
    %280 = vmatprep.subr.mxu0 0.0
    %281 = vmatpush1.msra.mxu0 0.0
    %282 = vmatprep.subr.mxu0 0.0
    %283 = vmatpush1.msra.mxu0 0.0
    %284 = vmatprep.subr.mxu0 0.0
    %285 = vmatpush1.msra.mxu0 0.0
    %286 = vmatprep.subr.mxu0 0.0
    %287 = vmatpush1.msra.mxu0 0.0
    %288 = vmatprep.subr.mxu0 0.0
    %289 = vmatpush1.msra.mxu0 0.0
    %290 = vmatprep.subr.mxu0 0.0
    %291 = vmatpush1.msra.mxu0 0.0
    %292 = vmatprep.subr.mxu0 0.0
    %293 = vmatpush1.msra.mxu0 0.0
    %294 = vmatprep.subr.mxu0 0.0
    %295 = vmatpush1.msra.mxu0 0.0
    %296 = vmatprep.subr.mxu0 0.0
    %297 = vmatpush1.msra.mxu0 0.0
    %298 = vmatprep.subr.mxu0 0.0
    %299 = vmatpush1.msra.mxu0 0.0
    %300 = vmatprep.subr.mxu0 0.0
    %301 = vmatpush1.msra.mxu0 0.0
    %302 = vmatprep.subr.mxu0 0.0
    %303 = vmatpush1.msra.mxu0 0.0
    %304 = vmatprep.subr.mxu0 0.0
    %305 = vmatpush1.msra.mxu0 0.0
    %306 = vmatprep.subr.mxu0 0.0
    %307 = vmatpush1.msra.mxu0 0.0
    %308 = vmatprep.subr.mxu0 0.0
    %309 = vmatpush1.msra.mxu0 0.0
    %310 = vmatprep.subr.mxu0 0.0
    %311 = vmatpush1.msra.mxu0 0.0
    %312 = vmatprep.subr.mxu0 0.0
    %313 = vmatpush1.msra.mxu0 0.0
    %314 = vmatprep.subr.mxu0 0.0
    %315 = vmatpush1.msra.mxu0 0.0
    %316 = vmatprep.subr.mxu0 0.0
    %317 = vmatpush1.msra.mxu0 0.0
    %318 = vmatprep.subr.mxu0 0.0
    %319 = vmatpush1.msra.mxu0 0.0
    %320 = vmatprep.subr.mxu0 0.0
    %321 = vmatpush1.msra.mxu0 0.0
    %322 = vmatprep.subr.mxu0 0.0
    %323 = vmatpush1.msra.mxu0 0.0
    %324 = vmatprep.subr.mxu0 0.0
    %325 = vmatpush1.msra.mxu0 0.0
    %326 = vmatprep.subr.mxu0 0.0
    %327 = vmatpush1.msra.mxu0 0.0
    %328 = vmatprep.subr.mxu0 0.0
    %329 = vmatpush1.msra.mxu0 0.0
    %330 = vmatprep.mubr.f32.mxu0 0.0
    %331 = vmatmul.mubr.f32.gmra.mrb[0].mxu0 %v69
    %v332 = vpop.f32.mrb[0].mxu0
    %v333 = vadd.f32 0.0, %v332
    %v334 = vpop.f32.mrb[0].mxu0
    %335 = vmatprep.mubr.f32.mxu0 0.0
    %336 = vmatmul.mubr.f32.gmra.mrb[0].mxu0 %v72
    %v337 = vpop.f32.mrb[0].mxu0
    %v338 = vadd.f32 0.0, %v337
    %v339 = vpop.f32.mrb[0].mxu0
    %340 = vmatprep.mubr.f32.mxu0 0.0
    %341 = vmatmul.mubr.f32.gmra.mrb[0].mxu0 %v75
    %v342 = vpop.f32.mrb[0].mxu0
    %v343 = vadd.f32 0.0, %v342
    %v344 = vpop.f32.mrb[0].mxu0
    %345 = vmatprep.mubr.f32.mxu0 0.0
    %346 = vmatmul.mubr.f32.gmra.mrb[0].mxu0 %v78
    %v347 = vpop.f32.mrb[0].mxu0
    %v348 = vadd.f32 0.0, %v347
    %v349 = vpop.f32.mrb[0].mxu0
    %350 = vmatprep.mubr.f32.mxu0 0.0
    %351 = vmatmul.mubr.f32.gmra.mrb[0].mxu0 %v81
    %v352 = vpop.f32.mrb[0].mxu0
    %v353 = vadd.f32 0.0, %v352
    %v354 = vpop.f32.mrb[0].mxu0
    %355 = vmatprep.mubr.f32.mxu0 0.0
    %356 = vmatmul.mubr.f32.gmra.mrb[0].mxu0 %v84
    %v357 = vpop.f32.mrb[0].mxu0
    %v358 = vadd.f32 0.0, %v357
    %v359 = vpop.f32.mrb[0].mxu0
    %360 = vmatprep.mubr.f32.mxu0 0.0
    %361 = vmatmul.mubr.f32.gmra.mrb[0].mxu0 %v87
    %v362 = vpop.f32.mrb[0].mxu0
    %v363 = vadd.f32 0.0, %v362
    %v364 = vpop.f32.mrb[0].mxu0
    %365 = vmatprep.mubr.f32.mxu0 0.0
    %366 = vmatmul.mubr.f32.gmra.mrb[0].mxu0 %v90
    %v367 = vpop.f32.mrb[0].mxu0
    %v368 = vadd.f32 0.0, %v367
    %v369 = vpop.f32.mrb[0].mxu0
    %370 = vmatprep.mubr.f32.mxu0 0.0
    %371 = vmatmul.mubr.f32.gmra.mrb[0].mxu0 %v93
    %v372 = vpop.f32.mrb[0].mxu0
    %v373 = vadd.f32 0.0, %v372
    %v374 = vpop.f32.mrb[0].mxu0
    %375 = vmatprep.mubr.f32.mxu0 0.0
    %376 = vmatmul.mubr.f32.gmra.mrb[0].mxu0 %v96
    %v377 = vpop.f32.mrb[0].mxu0
    %v378 = vadd.f32 0.0, %v377
    %v379 = vpop.f32.mrb[0].mxu0
    %380 = vmatprep.mubr.f32.mxu0 0.0
    %381 = vmatmul.mubr.f32.gmra.mrb[0].mxu0 %v99
    %v382 = vpop.f32.mrb[0].mxu0
    %v383 = vadd.f32 0.0, %v382
    %v384 = vpop.f32.mrb[0].mxu0
    %385 = vmatprep.mubr.f32.mxu0 0.0
    %386 = vmatmul.mubr.f32.gmra.mrb[0].mxu0 %v102
    %v387 = vpop.f32.mrb[0].mxu0
    %v388 = vadd.f32 0.0, %v387
    %v389 = vpop.f32.mrb[0].mxu0
    %390 = vmatprep.mubr.f32.mxu0 0.0
    %391 = vmatmul.mubr.f32.gmra.mrb[0].mxu0 %v105
    %v392 = vpop.f32.mrb[0].mxu0
    %v393 = vadd.f32 0.0, %v392
    %v394 = vpop.f32.mrb[0].mxu0
    %395 = vmatprep.mubr.f32.mxu0 0.0
    %396 = vmatmul.mubr.f32.gmra.mrb[0].mxu0 %v108
    %v397 = vpop.f32.mrb[0].mxu0
    %v398 = vadd.f32 0.0, %v397
    %v399 = vpop.f32.mrb[0].mxu0
    %400 = vmatprep.mubr.f32.mxu0 0.0
    %401 = vmatmul.mubr.f32.gmra.mrb[0].mxu0 %v111
    %v402 = vpop.f32.mrb[0].mxu0
    %v403 = vadd.f32 0.0, %v402
    %v404 = vpop.f32.mrb[0].mxu0
    %405 = vmatprep.mubr.f32.mxu0 0.0
    %406 = vmatmul.mubr.f32.gmra.mrb[0].mxu0 %v114
    %v407 = vpop.f32.mrb[0].mxu0
    %v408 = vadd.f32 0.0, %v407
    %v409 = vpop.f32.mrb[0].mxu0
    %410 = vdwg.mxu0
    %v411 = vsub.f32 %v15, %v31
    %v412 = vsub.f32 %v16, %v32
    %v413 = vsub.f32 %v17, %v33
    %v414 = vsub.f32 %v18, %v34
    %v415 = vsub.f32 %v19, %v35
    %v416 = vsub.f32 %v20, %v36
    %v417 = vsub.f32 %v21, %v37
    %v418 = vsub.f32 %v22, %v38
    %v419 = vsub.f32 %v23, %v39
    %v420 = vsub.f32 %v24, %v40
    %v421 = vsub.f32 %v25, %v41
    %v422 = vsub.f32 %v26, %v42
    %v423 = vsub.f32 %v27, %v43
    %v424 = vsub.f32 %v28, %v44
    %v425 = vsub.f32 %v29, %v45
    %v426 = vsub.f32 %v30, %v46
    %v427 = vmul.f32 %v411, %v333
    %v428 = vmul.f32 %v412, %v338
    %v429 = vmul.f32 %v413, %v343
    %v430 = vmul.f32 %v414, %v348
    %v431 = vmul.f32 %v415, %v353
    %v432 = vmul.f32 %v416, %v358
    %v433 = vmul.f32 %v417, %v363
    %v434 = vmul.f32 %v418, %v368
    %v435 = vmul.f32 %v419, %v373
    %v436 = vmul.f32 %v420, %v378
    %v437 = vmul.f32 %v421, %v383
    %v438 = vmul.f32 %v422, %v388
    %v439 = vmul.f32 %v423, %v393
    %v440 = vmul.f32 %v424, %v398
    %v441 = vmul.f32 %v425, %v403
    %v442 = vmul.f32 %v426, %v408
    %v443 = vsel %vm67, %v427, 0.0
    %444 = vadd.xlane.f32.xlu0 %v443
    %v445 = vpop.xlane.xlu0 %444
    %v446 = vsel %vm67, %v428, 0.0
    %447 = vadd.xlane.f32.xlu0 %v446
    %v448 = vpop.xlane.xlu0 %447
    %v449 = vsel %vm67, %v429, 0.0
    %450 = vadd.xlane.f32.xlu0 %v449
    %v451 = vpop.xlane.xlu0 %450
    %v452 = vsel %vm67, %v430, 0.0
    %453 = vadd.xlane.f32.xlu0 %v452
    %v454 = vpop.xlane.xlu0 %453
    %v455 = vsel %vm67, %v431, 0.0
    %456 = vadd.xlane.f32.xlu0 %v455
    %v457 = vpop.xlane.xlu0 %456
    %v458 = vsel %vm67, %v432, 0.0
    %459 = vadd.xlane.f32.xlu0 %v458
    %v460 = vpop.xlane.xlu0 %459
    %v461 = vsel %vm67, %v433, 0.0
    %462 = vadd.xlane.f32.xlu0 %v461
    %v463 = vpop.xlane.xlu0 %462
    %v464 = vsel %vm67, %v434, 0.0
    %465 = vadd.xlane.f32.xlu0 %v464
    %v466 = vpop.xlane.xlu0 %465
    %v467 = vsel %vm67, %v435, 0.0
    %468 = vadd.xlane.f32.xlu0 %v467
    %v469 = vpop.xlane.xlu0 %468
    %v470 = vsel %vm67, %v436, 0.0
    %471 = vadd.xlane.f32.xlu0 %v470
    %v472 = vpop.xlane.xlu0 %471
    %v473 = vsel %vm67, %v437, 0.0
    %474 = vadd.xlane.f32.xlu0 %v473
    %v475 = vpop.xlane.xlu0 %474
    %v476 = vsel %vm67, %v438, 0.0
    %477 = vadd.xlane.f32.xlu0 %v476
    %v478 = vpop.xlane.xlu0 %477
    %v479 = vsel %vm67, %v439, 0.0
    %480 = vadd.xlane.f32.xlu0 %v479
    %v481 = vpop.xlane.xlu0 %480
    %v482 = vsel %vm67, %v440, 0.0
    %483 = vadd.xlane.f32.xlu0 %v482
    %v484 = vpop.xlane.xlu0 %483
    %v485 = vsel %vm67, %v441, 0.0
    %486 = vadd.xlane.f32.xlu0 %v485
    %v487 = vpop.xlane.xlu0 %486
    %v488 = vsel %vm67, %v442, 0.0
    %489 = vadd.xlane.f32.xlu0 %v488
    %v490 = vpop.xlane.xlu0 %489
    %v491 = vmul.f32 %v445, %v333
    %v492 = vmul.f32 %v448, %v338
    %v493 = vmul.f32 %v451, %v343
    %v494 = vmul.f32 %v454, %v348
    %v495 = vmul.f32 %v457, %v353
    %v496 = vmul.f32 %v460, %v358
    %v497 = vmul.f32 %v463, %v363
    %v498 = vmul.f32 %v466, %v368
    %v499 = vmul.f32 %v469, %v373
    %v500 = vmul.f32 %v472, %v378
    %v501 = vmul.f32 %v475, %v383
    %v502 = vmul.f32 %v478, %v388
    %v503 = vmul.f32 %v481, %v393
    %v504 = vmul.f32 %v484, %v398
    %v505 = vmul.f32 %v487, %v403
    %v506 = vmul.f32 %v490, %v408
    %v507 = vsub.f32 %v411, %v491
    %v508 = vsub.f32 %v412, %v492
    %v509 = vsub.f32 %v413, %v493
    %v510 = vsub.f32 %v414, %v494
    %v511 = vsub.f32 %v415, %v495
    %v512 = vsub.f32 %v416, %v496
    %v513 = vsub.f32 %v417, %v497
    %v514 = vsub.f32 %v418, %v498
    %v515 = vsub.f32 %v419, %v499
    %v516 = vsub.f32 %v420, %v500
    %v517 = vsub.f32 %v421, %v501
    %v518 = vsub.f32 %v422, %v502
    %v519 = vsub.f32 %v423, %v503
    %v520 = vsub.f32 %v424, %v504
    %v521 = vsub.f32 %v425, %v505
    %v522 = vsub.f32 %v426, %v506
    %v523 = vadd.f32 %v507, %v183
    %v524 = vadd.f32 %v508, %v188
    %v525 = vadd.f32 %v509, %v193
    %v526 = vadd.f32 %v510, %v198
    %v527 = vadd.f32 %v511, %v203
    %v528 = vadd.f32 %v512, %v208
    %v529 = vadd.f32 %v513, %v213
    %v530 = vadd.f32 %v514, %v218
    %v531 = vadd.f32 %v515, %v223
    %v532 = vadd.f32 %v516, %v228
    %v533 = vadd.f32 %v517, %v233
    %v534 = vadd.f32 %v518, %v238
    %v535 = vadd.f32 %v519, %v243
    %v536 = vadd.f32 %v520, %v248
    %v537 = vadd.f32 %v521, %v253
    %v538 = vadd.f32 %v522, %v258
    %v539 = vand.u32 2147483647, %v523
    %v540 = vand.u32 2147483647, %v524
    %v541 = vand.u32 2147483647, %v525
    %v542 = vand.u32 2147483647, %v526
    %v543 = vand.u32 2147483647, %v527
    %v544 = vand.u32 2147483647, %v528
    %v545 = vand.u32 2147483647, %v529
    %v546 = vand.u32 2147483647, %v530
    %v547 = vand.u32 2147483647, %v531
    %v548 = vand.u32 2147483647, %v532
    %v549 = vand.u32 2147483647, %v533
    %v550 = vand.u32 2147483647, %v534
    %v551 = vand.u32 2147483647, %v535
    %v552 = vand.u32 2147483647, %v536
    %v553 = vand.u32 2147483647, %v537
    %v554 = vand.u32 2147483647, %v538
    %v555 = vsel %vm67, %v539, 0.0
    %556 = vadd.xlane.f32.xlu0 %v555
    %v557 = vpop.xlane.xlu0 %556
    %v558 = vsel %vm67, %v540, 0.0
    %559 = vadd.xlane.f32.xlu0 %v558
    %v560 = vpop.xlane.xlu0 %559
    %v561 = vsel %vm67, %v541, 0.0
    %562 = vadd.xlane.f32.xlu0 %v561
    %v563 = vpop.xlane.xlu0 %562
    %v564 = vsel %vm67, %v542, 0.0
    %565 = vadd.xlane.f32.xlu0 %v564
    %v566 = vpop.xlane.xlu0 %565
    %v567 = vsel %vm67, %v543, 0.0
    %568 = vadd.xlane.f32.xlu0 %v567
    %v569 = vpop.xlane.xlu0 %568
    %v570 = vsel %vm67, %v544, 0.0
    %571 = vadd.xlane.f32.xlu0 %v570
    %v572 = vpop.xlane.xlu0 %571
    %v573 = vsel %vm67, %v545, 0.0
    %574 = vadd.xlane.f32.xlu0 %v573
    %v575 = vpop.xlane.xlu0 %574
    %v576 = vsel %vm67, %v546, 0.0
    %577 = vadd.xlane.f32.xlu0 %v576
    %v578 = vpop.xlane.xlu0 %577
    %v579 = vsel %vm67, %v547, 0.0
    %580 = vadd.xlane.f32.xlu0 %v579
    %v581 = vpop.xlane.xlu0 %580
    %v582 = vsel %vm67, %v548, 0.0
    %583 = vadd.xlane.f32.xlu0 %v582
    %v584 = vpop.xlane.xlu0 %583
    %v585 = vsel %vm67, %v549, 0.0
    %586 = vadd.xlane.f32.xlu0 %v585
    %v587 = vpop.xlane.xlu0 %586
    %v588 = vsel %vm67, %v550, 0.0
    %589 = vadd.xlane.f32.xlu0 %v588
    %v590 = vpop.xlane.xlu0 %589
    %v591 = vsel %vm67, %v551, 0.0
    %592 = vadd.xlane.f32.xlu0 %v591
    %v593 = vpop.xlane.xlu0 %592
    %v594 = vsel %vm67, %v552, 0.0
    %595 = vadd.xlane.f32.xlu0 %v594
    %v596 = vpop.xlane.xlu0 %595
    %v597 = vsel %vm67, %v553, 0.0
    %598 = vadd.xlane.f32.xlu0 %v597
    %v599 = vpop.xlane.xlu0 %598
    %v600 = vsel %vm67, %v554, 0.0
    %601 = vadd.xlane.f32.xlu0 %v600
    %v602 = vpop.xlane.xlu0 %601
    %v619 = vlaneseq
    %v620 = vand.u32 %v619, 127
    %v621 = vlaneseq
    %v622 = vshrl.u32 %v621, 7
    %v623 = vsub.s32 %v620, %v622
    %v624 = vrot.slane %v557, %v623
    %v625 = vadd.s32 %v620, 4294967288
    %v626 = vlaneseq
    %v627 = vshrl.u32 %v626, 7
    %v628 = vsub.s32 %v625, %v627
    %v629 = vrot.slane %v560, %v628
    %vm630 = vcmask 130112
    %v631 = vsel %vm630, %v629, %v624
    %v632 = vadd.s32 %v620, 4294967280
    %v633 = vlaneseq
    %v634 = vshrl.u32 %v633, 7
    %v635 = vsub.s32 %v632, %v634
    %v636 = vrot.slane %v563, %v635
    %vm637 = vcmask 195712
    %v638 = vsel %vm637, %v636, %v631
    %v639 = vadd.s32 %v620, 4294967272
    %v640 = vlaneseq
    %v641 = vshrl.u32 %v640, 7
    %v642 = vsub.s32 %v639, %v641
    %v643 = vrot.slane %v566, %v642
    %vm644 = vcmask 261312
    %v645 = vsel %vm644, %v643, %v638
    %v646 = vadd.s32 %v620, 4294967264
    %v647 = vlaneseq
    %v648 = vshrl.u32 %v647, 7
    %v649 = vsub.s32 %v646, %v648
    %v650 = vrot.slane %v569, %v649
    %vm651 = vcmask 326912
    %v652 = vsel %vm651, %v650, %v645
    %v653 = vadd.s32 %v620, 4294967256
    %v654 = vlaneseq
    %v655 = vshrl.u32 %v654, 7
    %v656 = vsub.s32 %v653, %v655
    %v657 = vrot.slane %v572, %v656
    %vm658 = vcmask 392512
    %v659 = vsel %vm658, %v657, %v652
    %v660 = vadd.s32 %v620, 4294967248
    %v661 = vlaneseq
    %v662 = vshrl.u32 %v661, 7
    %v663 = vsub.s32 %v660, %v662
    %v664 = vrot.slane %v575, %v663
    %vm665 = vcmask 458112
    %v666 = vsel %vm665, %v664, %v659
    %v667 = vadd.s32 %v620, 4294967240
    %v668 = vlaneseq
    %v669 = vshrl.u32 %v668, 7
    %v670 = vsub.s32 %v667, %v669
    %v671 = vrot.slane %v578, %v670
    %vm672 = vcmask 523712
    %v673 = vsel %vm672, %v671, %v666
    %v674 = vadd.s32 %v620, 4294967232
    %v675 = vlaneseq
    %v676 = vshrl.u32 %v675, 7
    %v677 = vsub.s32 %v674, %v676
    %v678 = vrot.slane %v581, %v677
    %vm679 = vcmask 589312
    %v680 = vsel %vm679, %v678, %v673
    %v681 = vadd.s32 %v620, 4294967224
    %v682 = vlaneseq
    %v683 = vshrl.u32 %v682, 7
    %v684 = vsub.s32 %v681, %v683
    %v685 = vrot.slane %v584, %v684
    %vm686 = vcmask 654912
    %v687 = vsel %vm686, %v685, %v680
    %v688 = vadd.s32 %v620, 4294967216
    %v689 = vlaneseq
    %v690 = vshrl.u32 %v689, 7
    %v691 = vsub.s32 %v688, %v690
    %v692 = vrot.slane %v587, %v691
    %vm693 = vcmask 720512
    %v694 = vsel %vm693, %v692, %v687
    %v695 = vadd.s32 %v620, 4294967208
    %v696 = vlaneseq
    %v697 = vshrl.u32 %v696, 7
    %v698 = vsub.s32 %v695, %v697
    %v699 = vrot.slane %v590, %v698
    %vm700 = vcmask 786112
    %v701 = vsel %vm700, %v699, %v694
    %v702 = vadd.s32 %v620, 4294967200
    %v703 = vlaneseq
    %v704 = vshrl.u32 %v703, 7
    %v705 = vsub.s32 %v702, %v704
    %v706 = vrot.slane %v593, %v705
    %vm707 = vcmask 851712
    %v708 = vsel %vm707, %v706, %v701
    %v709 = vadd.s32 %v620, 4294967192
    %v710 = vlaneseq
    %v711 = vshrl.u32 %v710, 7
    %v712 = vsub.s32 %v709, %v711
    %v713 = vrot.slane %v596, %v712
    %vm714 = vcmask 917312
    %v715 = vsel %vm714, %v713, %v708
    %v716 = vadd.s32 %v620, 4294967184
    %v717 = vlaneseq
    %v718 = vshrl.u32 %v717, 7
    %v719 = vsub.s32 %v716, %v718
    %v720 = vrot.slane %v599, %v719
    %vm721 = vcmask 982912
    %v722 = vsel %vm721, %v720, %v715
    %v723 = vadd.s32 %v620, 4294967176
    %v724 = vlaneseq
    %v725 = vshrl.u32 %v724, 7
    %v726 = vsub.s32 %v723, %v725
    %v727 = vrot.slane %v602, %v726
    %vm728 = vcmask 1048512
    %v729 = vsel %vm728, %v727, %v722
    %731 = vst [vmem:[#allocation2] sm:$0x1] %v729
    // Predicated region
    $region14: #{tpu_custom_call.1} parent=1 // pred_check
      _
    $region15: #{tpu_custom_call.1} parent=1 // pred_check_branch
      %733 = sbr.rel (0) target = $region17
    $region16: #{tpu_custom_call.1} parent=1 // pred_region
      %s735 = ssub.s32 16, 16
      %736 = vsyncadd [#allocation3], %s735
      %s738 = sshll.u32 [#allocation2], 4
      %s739 = int_to_ptr.vmem [resolvable:$true] %s738
      %741 = dma.vmem_to_hbm [thread:$0]  %s739, 16, %s3, [#allocation3]
    $region17: #{tpu_custom_call.1} parent=1 // pred_fallthru
      _
    // Predicated region
    $region18: #{tpu_custom_call.1} parent=1 // pred_check
      _
    $region19: #{tpu_custom_call.1} parent=1 // pred_check_branch
      %743 = sbr.rel (0) target = $region21
    $region20: #{tpu_custom_call.1} parent=1 // pred_region
      %744 = dma.done [#allocation3], 16
    $region21: #{tpu_custom_call.1} parent=1 // pred_fallthru
      _
    %745 = vsyncpa [#allocation3], 1

</llo_original>
